<compile_context>
chip_gen: v6e
topology: v6e:2x2x1
jax: 0.10.0
libtpu: 0.0.40
codegen_flags: <defaults>
</compile_context>

<pallas_src>
import functools

import jax
import jax.numpy as jnp
from jax.experimental import pallas as pl
from jax.experimental.pallas import tpu as pltpu

HID_SIZE = 200      # logical hidden size (matches the PyTorch module)
HID_PAD = 256       # hidden padded: 2 MXU passes on v5e, 1 on v6e/v7x


def _round_up(x, m):
    return (x + m - 1) // m * m


def _cdiv(a, b):
    return -(-a // b)


def _tile_batch(B, block_batch, sublane, min_steps):
    """Pick (batch_tile, padded_batch) minimizing padding with >= min_steps
    grid steps when the batch allows (v7x megacore + pipelining)."""
    steps = max(_cdiv(B, block_batch), min(min_steps, _cdiv(B, sublane)), 1)
    bt = _round_up(_cdiv(B, steps), sublane)
    steps = _cdiv(B, bt)            # bt rounding may have reduced the count
    return bt, steps * bt           # padding is always < bt


def _a2c_fused_kernel(act_size, ep_dtype, x_ref, w1_ref, b1_ref, wh_ref,
                      bh_ref, out_ref):
    """Fused A2C forward for one batch tile.

    x_ref  : [bt, obs]            compute dtype (f32 or bf16)
    w1_ref : [obs, HID_PAD]       compute dtype
    b1_ref : [1, HID_PAD]         f32
    wh_ref : [HID_PAD, OUT_PAD]   compute dtype  (mu | var | val*scale | 0-pad)
    bh_ref : [1, OUT_PAD]         f32
    out_ref: [bt, OUT_PAD]        f32 or bf16    lane-dense fused output
    """
    x = x_ref[...]

    # base: Linear + ReLU (MXU, f32 accumulate; single bias broadcast-add)
    h = jnp.dot(x, w1_ref[...], preferred_element_type=jnp.float32) + b1_ref[...]
    h = jnp.maximum(h, 0.0)

    # fused heads: one matmul over the concatenated [mu | var | val] weights
    z = jnp.dot(h.astype(wh_ref.dtype), wh_ref[...],
                preferred_element_type=jnp.float32) + bh_ref[...]

    # epilogue: per-lane select of tanh / softplus / identity.
    # Transcendentals optionally in bf16 (v6e/v7x: 16 rows/vreg halves the
    # EUP/VPU work, the binding slot on v7x); adds/select stay in f32.
    col = jax.lax.broadcasted_iota(jnp.int32, z.shape, dimension=1)
    zt = z.astype(ep_dtype)
    tanh_z = jnp.tanh(zt).astype(jnp.float32)
    # numerically stable softplus: log1p(exp(-|z|)) + max(z, 0)
    softplus_z = (jnp.log1p(jnp.exp(-jnp.abs(zt))).astype(jnp.float32)
                  + jnp.maximum(z, 0.0))
    out = jnp.where(col < act_size, tanh_z,
                    jnp.where(col < 2 * act_size, softplus_z, z))

    # single unmasked lane-dense store
    out_ref[...] = out.astype(out_ref.dtype)


def prepare_params(params, val_scale=1.0, compute_dtype=jnp.float32):
    """Pad/fuse the raw per-head parameters into kernel-ready arrays.

    params: dict with w1[obs,200], b1[1,200], w_mu[200,act], b_mu[1,act],
            w_var[200,act], b_var[1,act], w_val[200,1], b_val[1,1]
            (weights stored as [in, out]).

    compute_dtype=bf16 halves x/w1/wh HBM+VMEM bytes on every generation
    (incl. v5e: the MXU takes bf16 and the epilogue can stay f32).
    """
    obs = params["w1"].shape[0]
    act = params["w_mu"].shape[1]
    assert act >= 1
    out_pad = _round_up(2 * act + 1, 128)   # generalizes beyond act<=63
    f32 = jnp.float32

    # base layer, hidden padded 200 -> 256 with zeros
    w1 = jnp.zeros((obs, HID_PAD), f32).at[:, :HID_SIZE].set(params["w1"].astype(f32))
    b1 = jnp.zeros((1, HID_PAD), f32).at[:, :HID_SIZE].set(params["b1"].astype(f32))

    # fused heads: columns = [mu | var | val*val_scale | zero pad], K padded to 256
    wh = jnp.zeros((HID_PAD, out_pad), f32)
    wh = wh.at[:HID_SIZE, 0:act].set(params["w_mu"].astype(f32))
    wh = wh.at[:HID_SIZE, act:2 * act].set(params["w_var"].astype(f32))
    wh = wh.at[:HID_SIZE, 2 * act:2 * act + 1].set(
        params["w_val"].astype(f32) * float(val_scale))
    bh = jnp.zeros((1, out_pad), f32)
    bh = bh.at[:, 0:act].set(params["b_mu"].astype(f32))
    bh = bh.at[:, act:2 * act].set(params["b_var"].astype(f32))
    bh = bh.at[:, 2 * act:2 * act + 1].set(
        params["b_val"].astype(f32) * float(val_scale))

    return dict(
        act_size=act, obs_size=obs, out_pad=out_pad, compute_dtype=compute_dtype,
        w1=w1.astype(compute_dtype), b1=b1,          # biases stay f32 (post-acc add)
        wh=wh.astype(compute_dtype), bh=bh,
    )


def a2c_forward(x, prepared, *, block_batch=1024, min_grid_steps=4,
                out_dtype=jnp.float32, epilogue_dtype=jnp.float32,
                return_packed=False, vmem_limit_bytes=None):
    """Fused A2C forward.

    Returns (mu [B,act], var [B,act], value [B,1]) — or, with
    return_packed=True, the raw [B, OUT_PAD] slab whose lanes are
    [mu | var | value | zero-pad] so a consumer jit can slice without an
    extra HBM round trip.

    out_dtype / epilogue_dtype = bf16 are optional perf knobs (see module
    docstring); keep f32 when downstream math (log-prob / advantages) is
    precision sensitive.
    """
    act = prepared["act_size"]
    obs = prepared["obs_size"]
    out_pad = prepared["out_pad"]
    cdt = prepared["compute_dtype"]
    B = x.shape[0]

    # sublane granularity: 16 when any packed (sub-32-bit) tile is involved
    sub = 8
    if jnp.dtype(cdt).itemsize < 4 or jnp.dtype(out_dtype).itemsize < 4:
        sub = 16

    # batch tile: minimal padding, >= min_grid_steps steps when possible.
    bt, Bp = _tile_batch(B, block_batch, sub, min_grid_steps)
    xp = x.astype(cdt)
    if Bp != B:
        xp = jnp.pad(xp, ((0, Bp - B), (0, 0)))

    grid = (Bp // bt,)

    in_itemsize = jnp.dtype(cdt).itemsize
    out_itemsize = jnp.dtype(out_dtype).itemsize
    weight_bytes = (obs * HID_PAD + HID_PAD * out_pad) * in_itemsize \
        + (HID_PAD + out_pad) * 4
    cost = pl.CostEstimate(
        flops=2 * Bp * (obs * HID_PAD + HID_PAD * out_pad),
        transcendentals=3 * Bp * out_pad,
        bytes_accessed=Bp * obs * in_itemsize + weight_bytes
        + Bp * out_pad * out_itemsize,
    )

    kernel = functools.partial(_a2c_fused_kernel, act, epilogue_dtype)

    def _const_spec(shape, weight_mode):
        if weight_mode is None:
            return pl.BlockSpec(shape, lambda i: (0, 0))
        return pl.BlockSpec(shape, lambda i: (0, 0), pipeline_mode=weight_mode)

    def _run(weight_mode):
        return pl.pallas_call(
            kernel,
            out_shape=jax.ShapeDtypeStruct((Bp, out_pad), out_dtype),
            grid=grid,
            in_specs=[
                pl.BlockSpec((bt, obs), lambda i: (i, 0)),       # x: tiled over batch
                _const_spec((obs, HID_PAD), weight_mode),        # weights: VMEM-resident
                _const_spec((1, HID_PAD), weight_mode),
                _const_spec((HID_PAD, out_pad), weight_mode),
                _const_spec((1, out_pad), weight_mode),
            ],
            out_specs=pl.BlockSpec((bt, out_pad), lambda i: (i, 0)),
            compiler_params=pltpu.CompilerParams(
                dimension_semantics=("parallel",),               # megacore sharding on v7x
                vmem_limit_bytes=vmem_limit_bytes),
            cost_estimate=cost,
        )(xp, prepared["w1"], prepared["b1"], prepared["wh"], prepared["bh"])

    # Single-buffer the constant weight/bias blocks (VMEM headroom on v7x);
    # fall back to default double-buffering if this jax lacks pipeline_mode.
    try:
        out = _run(pl.Buffered(1) if hasattr(pl, "Buffered") else None)
    except Exception:
        out = _run(None)

    if return_packed:
        return out[:B]                     # lanes: [mu | var | value | 0-pad]

    mu = out[:B, 0:act]
    var = out[:B, act:2 * act]
    val = out[:B, 2 * act:2 * act + 1]
    return mu, var, val


def init_params(key, obs_size, act_size):
    """Deterministic parameter init (uniform, PyTorch-Linear-like fan-in scaling)."""
    ks = jax.random.split(key, 8)

    def linear(kw, kb, fan_in, fan_out):
        bound = 1.0 / jnp.sqrt(fan_in)
        w = jax.random.uniform(kw, (fan_in, fan_out), jnp.float32, -bound, bound)
        b = jax.random.uniform(kb, (1, fan_out), jnp.float32, -bound, bound)
        return w, b

    w1, b1 = linear(ks[0], ks[1], obs_size, HID_SIZE)
    w_mu, b_mu = linear(ks[2], ks[3], HID_SIZE, act_size)
    w_var, b_var = linear(ks[4], ks[5], HID_SIZE, act_size)
    w_val, b_val = linear(ks[6], ks[7], HID_SIZE, 1)
    return dict(w1=w1, b1=b1, w_mu=w_mu, b_mu=b_mu,
                w_var=w_var, b_var=b_var, w_val=w_val, b_val=b_val)


if __name__ == "__main__":
    key = jax.random.PRNGKey(0)
    k_x, k_p = jax.random.split(key)

    B, OBS, ACT = 8, 32, 8
    VAL_SCALE = 0.5

    x = jax.random.normal(k_x, (B, OBS), jnp.float32)
    params = init_params(k_p, OBS, ACT)

    # Pure-JAX reference of the original module math.
    h_ref = jnp.maximum(x @ params["w1"] + params["b1"], 0.0)
    mu_ref = jnp.tanh(h_ref @ params["w_mu"] + params["b_mu"])
    var_ref = jax.nn.softplus(h_ref @ params["w_var"] + params["b_var"])
    val_ref = (h_ref @ params["w_val"] + params["b_val"]) * VAL_SCALE

    # f32 path (exact semantics) — tight check.
    prepared = prepare_params(params, val_scale=VAL_SCALE, compute_dtype=jnp.float32)
    mu, var, val = a2c_forward(x, prepared)
    jax.block_until_ready((mu, var, val))

    assert mu.shape == (B, ACT) and var.shape == (B, ACT) and val.shape == (B, 1)
    assert jnp.allclose(mu, mu_ref, atol=1e-5)
    assert jnp.allclose(var, var_ref, atol=1e-5)
    assert jnp.allclose(val, val_ref, atol=1e-5)

    # fully bf16-lean path: bf16 matmul operands, bf16 output stream, bf16
    # epilogue transcendentals (f32 accumulation + f32 adds/select) — the
    # HBM/EUP-optimized configuration for v5e/v6e/v7x.  Loose check.
    prepared_bf16 = prepare_params(params, val_scale=VAL_SCALE,
                                   compute_dtype=jnp.bfloat16)
    mu16, var16, val16 = a2c_forward(x, prepared_bf16,
                                     out_dtype=jnp.bfloat16,
                                     epilogue_dtype=jnp.bfloat16)
    jax.block_until_ready((mu16, var16, val16))
    assert jnp.allclose(mu16.astype(jnp.float32), mu_ref, atol=1e-1, rtol=1e-1)
    assert jnp.allclose(var16.astype(jnp.float32), var_ref, atol=1e-1, rtol=1e-1)
    assert jnp.allclose(val16.astype(jnp.float32), val_ref, atol=1e-1, rtol=1e-1)

    # packed-slab output path (avoids post-kernel slice materialization).
    packed = a2c_forward(x, prepared, return_packed=True)
    jax.block_until_ready(packed)
    assert packed.shape == (B, prepared["out_pad"])
    assert jnp.allclose(packed[:, 0:ACT], mu_ref, atol=1e-5)

    # odd batch size exercises the minimal-padding / multi-step tiling path.
    B2 = 40
    x2 = jax.random.normal(jax.random.PRNGKey(1), (B2, OBS), jnp.float32)
    h2 = jnp.maximum(x2 @ params["w1"] + params["b1"], 0.0)
    mu2_ref = jnp.tanh(h2 @ params["w_mu"] + params["b_mu"])
    mu2, var2, val2 = a2c_forward(x2, prepared, block_batch=16)
    jax.block_until_ready((mu2, var2, val2))
    assert mu2.shape == (B2, ACT) and val2.shape == (B2, 1)
    assert jnp.allclose(mu2, mu2_ref, atol=1e-5)

    print("KERNEL_OK")
</pallas_src>

<mosaic_0001>
module attributes {stable_mosaic.version = 11 : i64} {
  func.func @_a2c_fused_kernel(%arg0: i32, %arg1: memref<8x32xf32, #tpu.memory_space<vmem>>, %arg2: memref<32x256xf32, #tpu.memory_space<vmem>>, %arg3: memref<1x256xf32, #tpu.memory_space<vmem>>, %arg4: memref<256x128xf32, #tpu.memory_space<vmem>>, %arg5: memref<1x128xf32, #tpu.memory_space<vmem>>, %arg6: memref<8x128xf32, #tpu.memory_space<vmem>>) attributes {dimension_semantics = [#tpu.dimension_semantics<parallel>], iteration_bounds = array<i64: 1>, scalar_prefetch = 0 : i64, scratch_operands = 0 : i64, tpu.core_type = #tpu.core_type<tc>, window_params = [{transform_indices = @transform_0, window_bounds = array<i64: 8, 32>}, {pipeline_mode = #tpu.pipeline_mode<synchronous>, transform_indices = @transform_1, window_bounds = array<i64: 32, 256>}, {pipeline_mode = #tpu.pipeline_mode<synchronous>, transform_indices = @transform_2, window_bounds = array<i64: 1, 256>}, {pipeline_mode = #tpu.pipeline_mode<synchronous>, transform_indices = @transform_3, window_bounds = array<i64: 256, 128>}, {pipeline_mode = #tpu.pipeline_mode<synchronous>, transform_indices = @transform_4, window_bounds = array<i64: 1, 128>}, {transform_indices = @transform_5, window_bounds = array<i64: 8, 128>}]} {
    %c0 = arith.constant 0 : index
    %c0_0 = arith.constant 0 : index
    %0 = vector.load %arg1[%c0, %c0_0] : memref<8x32xf32, #tpu.memory_space<vmem>>, vector<8x32xf32>
    %c0_1 = arith.constant 0 : index
    %c0_2 = arith.constant 0 : index
    %1 = vector.load %arg2[%c0_1, %c0_2] : memref<32x256xf32, #tpu.memory_space<vmem>>, vector<32x256xf32>
    %cst = arith.constant dense<0.000000e+00> : vector<8x256xf32>
    %2 = tpu.matmul %0, %1, %cst {dimension_numbers = #tpu.dot_dimension_numbers<[1], [0], [0], [1], [0, 0, 1, 1], [], []>} : vector<8x32xf32>, vector<32x256xf32>, vector<8x256xf32> -> vector<8x256xf32>
    %c0_3 = arith.constant 0 : index
    %c0_4 = arith.constant 0 : index
    %3 = vector.load %arg3[%c0_3, %c0_4] : memref<1x256xf32, #tpu.memory_space<vmem>>, vector<1x256xf32>
    %4 = vector.broadcast %3 : vector<1x256xf32> to vector<8x256xf32>
    %5 = arith.addf %2, %4 : vector<8x256xf32>
    %cst_5 = arith.constant 0.000000e+00 : f32
    %6 = vector.broadcast %cst_5 : f32 to vector<8x256xf32>
    %7 = arith.maximumf %5, %6 : vector<8x256xf32>
    %c0_6 = arith.constant 0 : index
    %c0_7 = arith.constant 0 : index
    %8 = vector.load %arg4[%c0_6, %c0_7] : memref<256x128xf32, #tpu.memory_space<vmem>>, vector<256x128xf32>
    %cst_8 = arith.constant dense<0.000000e+00> : vector<8x128xf32>
    %9 = tpu.matmul %7, %8, %cst_8 {dimension_numbers = #tpu.dot_dimension_numbers<[1], [0], [0], [1], [0, 0, 1, 1], [], []>} : vector<8x256xf32>, vector<256x128xf32>, vector<8x128xf32> -> vector<8x128xf32>
    %c0_9 = arith.constant 0 : index
    %c0_10 = arith.constant 0 : index
    %10 = vector.load %arg5[%c0_9, %c0_10] : memref<1x128xf32, #tpu.memory_space<vmem>>, vector<1x128xf32>
    %11 = vector.broadcast %10 : vector<1x128xf32> to vector<8x128xf32>
    %12 = arith.addf %9, %11 : vector<8x128xf32>
    %13 = tpu.iota {dimensions = array<i32: 1>} : vector<8x128xi32>
    %14 = math.tanh %12 : vector<8x128xf32>
    %15 = math.absf %12 : vector<8x128xf32>
    %cst_11 = arith.constant 0.000000e+00 : f32
    %16 = vector.broadcast %cst_11 : f32 to vector<8x128xf32>
    %17 = arith.subf %16, %15 : vector<8x128xf32>
    %18 = math.exp %17 : vector<8x128xf32>
    %19 = math.log1p %18 : vector<8x128xf32>
    %cst_12 = arith.constant 0.000000e+00 : f32
    %20 = vector.broadcast %cst_12 : f32 to vector<8x128xf32>
    %21 = arith.maximumf %12, %20 : vector<8x128xf32>
    %22 = arith.addf %19, %21 : vector<8x128xf32>
    %c8_i32 = arith.constant 8 : i32
    %23 = vector.broadcast %c8_i32 : i32 to vector<8x128xi32>
    %24 = arith.cmpi slt, %13, %23 : vector<8x128xi32>
    %c16_i32 = arith.constant 16 : i32
    %25 = vector.broadcast %c16_i32 : i32 to vector<8x128xi32>
    %26 = arith.cmpi slt, %13, %25 : vector<8x128xi32>
    %27 = arith.select %26, %22, %12 : vector<8x128xi1>, vector<8x128xf32>
    %28 = arith.select %24, %14, %27 : vector<8x128xi1>, vector<8x128xf32>
    %c0_13 = arith.constant 0 : index
    %c0_14 = arith.constant 0 : index
    %29 = vector.load %arg6[%c0_13, %c0_14] : memref<8x128xf32, #tpu.memory_space<vmem>>, vector<8x128xf32>
    tpu.vector_store %arg6[%c0_13, %c0_14], %28 {strides = array<i32>} : memref<8x128xf32, #tpu.memory_space<vmem>>, vector<8x128xf32>,
    return
  }
  func.func @transform_0(%arg0: i32) -> (i32, i32) {
    %c0_i32 = arith.constant 0 : i32
    %c0_i32_0 = arith.constant 0 : i32
    return %arg0, %c0_i32 : i32, i32
  }
  func.func @transform_1(%arg0: i32) -> (i32, i32) {
    %c0_i32 = arith.constant 0 : i32
    %c0_i32_0 = arith.constant 0 : i32
    %c0_i32_1 = arith.constant 0 : i32
    return %c0_i32, %c0_i32_0 : i32, i32
  }
  func.func @transform_2(%arg0: i32) -> (i32, i32) {
    %c0_i32 = arith.constant 0 : i32
    %c0_i32_0 = arith.constant 0 : i32
    %c0_i32_1 = arith.constant 0 : i32
    return %c0_i32, %c0_i32_0 : i32, i32
  }
  func.func @transform_3(%arg0: i32) -> (i32, i32) {
    %c0_i32 = arith.constant 0 : i32
    %c0_i32_0 = arith.constant 0 : i32
    %c0_i32_1 = arith.constant 0 : i32
    return %c0_i32, %c0_i32_0 : i32, i32
  }
  func.func @transform_4(%arg0: i32) -> (i32, i32) {
    %c0_i32 = arith.constant 0 : i32
    %c0_i32_0 = arith.constant 0 : i32
    %c0_i32_1 = arith.constant 0 : i32
    return %c0_i32, %c0_i32_0 : i32, i32
  }
  func.func @transform_5(%arg0: i32) -> (i32, i32) {
    %c0_i32 = arith.constant 0 : i32
    %c0_i32_0 = arith.constant 0 : i32
    return %arg0, %c0_i32 : i32, i32
  }
}

module attributes {stable_mosaic.version = 11 : i64} {
  func.func @_a2c_fused_kernel(%arg0: i32, %arg1: memref<8x32xf32, #tpu.memory_space<vmem>>, %arg2: memref<32x256xf32, #tpu.memory_space<vmem>>, %arg3: memref<1x256xf32, #tpu.memory_space<vmem>>, %arg4: memref<256x128xf32, #tpu.memory_space<vmem>>, %arg5: memref<1x128xf32, #tpu.memory_space<vmem>>, %arg6: memref<8x128xf32, #tpu.memory_space<vmem>>) attributes {dimension_semantics = [#tpu.dimension_semantics<parallel>], iteration_bounds = array<i64: 1>, scalar_prefetch = 0 : i64, scratch_operands = 0 : i64, tpu.core_type = #tpu.core_type<tc>, window_params = [{transform_indices = @transform_0, window_bounds = array<i64: 8, 32>}, {pipeline_mode = #tpu.pipeline_mode<synchronous>, transform_indices = @transform_1, window_bounds = array<i64: 32, 256>}, {pipeline_mode = #tpu.pipeline_mode<synchronous>, transform_indices = @transform_2, window_bounds = array<i64: 1, 256>}, {pipeline_mode = #tpu.pipeline_mode<synchronous>, transform_indices = @transform_3, window_bounds = array<i64: 256, 128>}, {pipeline_mode = #tpu.pipeline_mode<synchronous>, transform_indices = @transform_4, window_bounds = array<i64: 1, 128>}, {transform_indices = @transform_5, window_bounds = array<i64: 8, 128>}]} {
    %c0 = arith.constant 0 : index
    %c0_0 = arith.constant 0 : index
    %0 = vector.load %arg1[%c0, %c0_0] : memref<8x32xf32, #tpu.memory_space<vmem>>, vector<8x32xf32>
    %c0_1 = arith.constant 0 : index
    %c0_2 = arith.constant 0 : index
    %1 = vector.load %arg2[%c0_1, %c0_2] : memref<32x256xf32, #tpu.memory_space<vmem>>, vector<32x256xf32>
    %cst = arith.constant dense<0.000000e+00> : vector<8x256xf32>
    %2 = tpu.matmul %0, %1, %cst {dimension_numbers = #tpu.dot_dimension_numbers<[1], [0], [0], [1], [0, 0, 1, 1], [], []>} : vector<8x32xf32>, vector<32x256xf32>, vector<8x256xf32> -> vector<8x256xf32>
    %c0_3 = arith.constant 0 : index
    %c0_4 = arith.constant 0 : index
    %3 = vector.load %arg3[%c0_3, %c0_4] : memref<1x256xf32, #tpu.memory_space<vmem>>, vector<1x256xf32>
    %4 = vector.broadcast %3 : vector<1x256xf32> to vector<8x256xf32>
    %5 = arith.addf %2, %4 : vector<8x256xf32>
    %cst_5 = arith.constant 0.000000e+00 : f32
    %6 = vector.broadcast %cst_5 : f32 to vector<8x256xf32>
    %7 = arith.maximumf %5, %6 : vector<8x256xf32>
    %c0_6 = arith.constant 0 : index
    %c0_7 = arith.constant 0 : index
    %8 = vector.load %arg4[%c0_6, %c0_7] : memref<256x128xf32, #tpu.memory_space<vmem>>, vector<256x128xf32>
    %cst_8 = arith.constant dense<0.000000e+00> : vector<8x128xf32>
    %9 = tpu.matmul %7, %8, %cst_8 {dimension_numbers = #tpu.dot_dimension_numbers<[1], [0], [0], [1], [0, 0, 1, 1], [], []>} : vector<8x256xf32>, vector<256x128xf32>, vector<8x128xf32> -> vector<8x128xf32>
    %c0_9 = arith.constant 0 : index
    %c0_10 = arith.constant 0 : index
    %10 = vector.load %arg5[%c0_9, %c0_10] : memref<1x128xf32, #tpu.memory_space<vmem>>, vector<1x128xf32>
    %11 = vector.broadcast %10 : vector<1x128xf32> to vector<8x128xf32>
    %12 = arith.addf %9, %11 : vector<8x128xf32>
    %13 = tpu.iota {dimensions = array<i32: 1>} : vector<8x128xi32>
    %14 = math.tanh %12 : vector<8x128xf32>
    %15 = math.absf %12 : vector<8x128xf32>
    %cst_11 = arith.constant 0.000000e+00 : f32
    %16 = vector.broadcast %cst_11 : f32 to vector<8x128xf32>
    %17 = arith.subf %16, %15 : vector<8x128xf32>
    %18 = math.exp %17 : vector<8x128xf32>
    %19 = math.log1p %18 : vector<8x128xf32>
    %cst_12 = arith.constant 0.000000e+00 : f32
    %20 = vector.broadcast %cst_12 : f32 to vector<8x128xf32>
    %21 = arith.maximumf %12, %20 : vector<8x128xf32>
    %22 = arith.addf %19, %21 : vector<8x128xf32>
    %c8_i32 = arith.constant 8 : i32
    %23 = vector.broadcast %c8_i32 : i32 to vector<8x128xi32>
    %24 = arith.cmpi slt, %13, %23 : vector<8x128xi32>
    %c16_i32 = arith.constant 16 : i32
    %25 = vector.broadcast %c16_i32 : i32 to vector<8x128xi32>
    %26 = arith.cmpi slt, %13, %25 : vector<8x128xi32>
    %27 = arith.select %26, %22, %12 : vector<8x128xi1>, vector<8x128xf32>
    %28 = arith.select %24, %14, %27 : vector<8x128xi1>, vector<8x128xf32>
    %c0_13 = arith.constant 0 : index
    %c0_14 = arith.constant 0 : index
    %29 = vector.load %arg6[%c0_13, %c0_14] : memref<8x128xf32, #tpu.memory_space<vmem>>, vector<8x128xf32>
    tpu.vector_store %arg6[%c0_13, %c0_14], %28 {strides = array<i32>} : memref<8x128xf32, #tpu.memory_space<vmem>>, vector<8x128xf32>,
    return
  }
  func.func @transform_0(%arg0: i32) -> (i32, i32) {
    %c0_i32 = arith.constant 0 : i32
    %c0_i32_0 = arith.constant 0 : i32
    return %arg0, %c0_i32 : i32, i32
  }
  func.func @transform_1(%arg0: i32) -> (i32, i32) {
    %c0_i32 = arith.constant 0 : i32
    %c0_i32_0 = arith.constant 0 : i32
    %c0_i32_1 = arith.constant 0 : i32
    return %c0_i32, %c0_i32_0 : i32, i32
  }
  func.func @transform_2(%arg0: i32) -> (i32, i32) {
    %c0_i32 = arith.constant 0 : i32
    %c0_i32_0 = arith.constant 0 : i32
    %c0_i32_1 = arith.constant 0 : i32
    return %c0_i32, %c0_i32_0 : i32, i32
  }
  func.func @transform_3(%arg0: i32) -> (i32, i32) {
    %c0_i32 = arith.constant 0 : i32
    %c0_i32_0 = arith.constant 0 : i32
    %c0_i32_1 = arith.constant 0 : i32
    return %c0_i32, %c0_i32_0 : i32, i32
  }
  func.func @transform_4(%arg0: i32) -> (i32, i32) {
    %c0_i32 = arith.constant 0 : i32
    %c0_i32_0 = arith.constant 0 : i32
    %c0_i32_1 = arith.constant 0 : i32
    return %c0_i32, %c0_i32_0 : i32, i32
  }
  func.func @transform_5(%arg0: i32) -> (i32, i32) {
    %c0_i32 = arith.constant 0 : i32
    %c0_i32_0 = arith.constant 0 : i32
    return %arg0, %c0_i32 : i32, i32
  }
}

</mosaic_0001>

<llo_original>
// kernel: tpu_custom_call.1
$region0: #{tpu_custom_call.1}
  #allocation0 [shape = 'u32[]', space=smem, size = 0x4, offset = 0x4, fixed_abs, tag = 'smem constant byte address 0x4 - core index']
  #allocation1 [shape = 'u32[144,128]{1,0:T(1,128)}', space=vmem, size = 0x12000, scoped, tag = 'internal scratch']
  %s0 = inlined_call_operand.hbm [shape: f32[8,32], index: 0, kind: input, shape index: {}]
  %s1 = inlined_call_operand.hbm [shape: f32[32,256], index: 1, kind: input, shape index: {}]
  %s2 = inlined_call_operand.vmem [shape: f32[1,256], index: 2, kind: input, shape index: {}]
  %s3 = inlined_call_operand.hbm [shape: f32[256,128], index: 3, kind: input, shape index: {}]
  %s4 = inlined_call_operand.vmem [shape: f32[1,128], index: 4, kind: input, shape index: {}]
  %s5 = inlined_call_operand.hbm [shape: f32[8,128], index: 5, kind: output, shape index: {}]
  %s6 = sld [smem:[#allocation0]]
  $region42: #{tpu_custom_call.1} parent=0
    _
  %s8 = ssub.s32 1, %s6
  %s9 = scalar_select 0, %s8, %s6
  $region1: #{tpu_custom_call.1} parent=0
    #allocation2 [shape = 'u8[4096]{0}', space=vmem, size = 0x1000, scoped, tag = 'input window, operand 0, single buffered']
    #allocation3 [shape = 's32[1]{0}', space=sflag, size = 0x4, scoped, tag = 'scoped memory for tpu_custom_call.1']
    #allocation4 [shape = 's32[1]{0}', space=sflag, size = 0x4, scoped, tag = 'scoped memory for tpu_custom_call.1']
    #allocation5 [shape = 'u8[32768]{0}', space=vmem, size = 0x8000, scoped, tag = 'input window, operand 1, single buffered']
    #allocation6 [shape = 's32[1]{0}', space=sflag, size = 0x4, scoped, tag = 'scoped memory for tpu_custom_call.1']
    #allocation7 [shape = 'u8[131072]{0}', space=vmem, size = 0x20000, scoped, tag = 'input window, operand 3, single buffered']
    #allocation8 [shape = 'u8[4096]{0}', space=vmem, size = 0x1000, scoped, tag = 'output window, operand 0, single buffered']
    %10 = vsyncpa [#allocation3], 0
    %11 = vsyncpa [#allocation6], 0
    %12 = vsyncpa [#allocation4], 0
    // Predicated region
    $region2: #{tpu_custom_call.1} parent=1 // pred_check
      _
    $region3: #{tpu_custom_call.1} parent=1 // pred_check_branch
      %14 = sbr.rel (0) target = $region5
    $region4: #{tpu_custom_call.1} parent=1 // pred_region
      %s16 = ssub.s32 128, 128
      %17 = vsyncadd [#allocation3], %s16
      %s19 = sshll.u32 [#allocation2], 4
      %s20 = int_to_ptr.vmem [resolvable:$true] %s19
      %22 = dma.hbm_to_vmem [thread:$0]  %s0, 128, %s20, [#allocation3]
    $region5: #{tpu_custom_call.1} parent=1 // pred_fallthru
      _
    // Predicated region
    $region6: #{tpu_custom_call.1} parent=1 // pred_check
      _
    $region7: #{tpu_custom_call.1} parent=1 // pred_check_branch
      %24 = sbr.rel (0) target = $region9
    $region8: #{tpu_custom_call.1} parent=1 // pred_region
      %s26 = ssub.s32 1024, 1024
      %27 = vsyncadd [#allocation6], %s26
      %s28 = sshll.u32 [#allocation5], 4
      %s29 = int_to_ptr.vmem [resolvable:$true] %s28
      %34 = dma.hbm_to_vmem [thread:$0]  %s1, 1024, %s29, [#allocation6], 256, 256, 16
    $region9: #{tpu_custom_call.1} parent=1 // pred_fallthru
      _
    // Predicated region
    $region10: #{tpu_custom_call.1} parent=1 // pred_check
      _
    $region11: #{tpu_custom_call.1} parent=1 // pred_check_branch
      %36 = sbr.rel (0) target = $region13
    $region12: #{tpu_custom_call.1} parent=1 // pred_region
      _
    $region13: #{tpu_custom_call.1} parent=1 // pred_fallthru
      _
    // Predicated region
    $region14: #{tpu_custom_call.1} parent=1 // pred_check
      _
    $region15: #{tpu_custom_call.1} parent=1 // pred_check_branch
      %38 = sbr.rel (0) target = $region17
    $region16: #{tpu_custom_call.1} parent=1 // pred_region
      %s40 = ssub.s32 4096, 4096
      %41 = vsyncadd [#allocation6], %s40
      %s42 = sshll.u32 [#allocation7], 4
      %s43 = int_to_ptr.vmem [resolvable:$true] %s42
      %48 = dma.hbm_to_vmem [thread:$0]  %s3, 4096, %s43, [#allocation6], 128, 128, 8
    $region17: #{tpu_custom_call.1} parent=1 // pred_fallthru
      _
    // Predicated region
    $region18: #{tpu_custom_call.1} parent=1 // pred_check
      _
    $region19: #{tpu_custom_call.1} parent=1 // pred_check_branch
      %50 = sbr.rel (0) target = $region21
    $region20: #{tpu_custom_call.1} parent=1 // pred_region
      _
    $region21: #{tpu_custom_call.1} parent=1 // pred_fallthru
      _
    // Predicated region
    $region22: #{tpu_custom_call.1} parent=1 // pred_check
      _
    $region23: #{tpu_custom_call.1} parent=1 // pred_check_branch
      %52 = sbr.rel (0) target = $region25
    $region24: #{tpu_custom_call.1} parent=1 // pred_region
      %53 = dma.done [#allocation3], 128
    $region25: #{tpu_custom_call.1} parent=1 // pred_fallthru
      _
    // Predicated region
    $region26: #{tpu_custom_call.1} parent=1 // pred_check
      _
    $region27: #{tpu_custom_call.1} parent=1 // pred_check_branch
      %55 = sbr.rel (0) target = $region29
    $region28: #{tpu_custom_call.1} parent=1 // pred_region
      %56 = dma.done [#allocation6], 1024
    $region29: #{tpu_custom_call.1} parent=1 // pred_fallthru
      _
    // Predicated region
    $region30: #{tpu_custom_call.1} parent=1 // pred_check
      _
    $region31: #{tpu_custom_call.1} parent=1 // pred_check_branch
      %58 = sbr.rel (0) target = $region33
    $region32: #{tpu_custom_call.1} parent=1 // pred_region
      %59 = dma.done [#allocation6], 4096
    $region33: #{tpu_custom_call.1} parent=1 // pred_fallthru
      _
    %v60 = vld [vmem:[#allocation2] sm:$0xff]
    %v61 = vld [vmem:[#allocation5] sm:$0xff]
    %v62 = vld [vmem:[#allocation5 + $0x8] sm:$0xff]
    %v63 = vld [vmem:[#allocation5 + $0x10] sm:$0xff]
    %v64 = vld [vmem:[#allocation5 + $0x18] sm:$0xff]
    %v65 = vld [vmem:[#allocation5 + $0x20] sm:$0xff]
    %v66 = vld [vmem:[#allocation5 + $0x28] sm:$0xff]
    %v67 = vld [vmem:[#allocation5 + $0x30] sm:$0xff]
    %v68 = vld [vmem:[#allocation5 + $0x38] sm:$0xff]
    %v69 = vld [vmem:[%s2] sm:$0x3]
    %v71 = vlaneseq
    %v72 = vshrl.u32 %v71, 7
    %v73 = vsub.s32 0, %v72
    %v74 = vrot.slane %v69, %v73
    %v75 = vlaneseq
    %v76 = vshrl.u32 %v75, 7
    %v77 = vsub.s32 1, %v76
    %v78 = vrot.slane %v69, %v77
    %vm81 = vcmask 261120
    %v83 = vsel %vm81, %v60, 0
    %85 = vmatprep.subr.mxu0 0.0
    %86 = vmatpush1.msra.mxu0 0.0
    %87 = vmatprep.subr.mxu0 0.0
    %88 = vmatpush1.msra.mxu0 0.0
    %89 = vmatprep.subr.mxu0 0.0
    %90 = vmatpush1.msra.mxu0 0.0
    %91 = vmatprep.subr.mxu0 0.0
    %92 = vmatpush1.msra.mxu0 0.0
    %93 = vmatprep.subr.mxu0 0.0
    %94 = vmatpush1.msra.mxu0 0.0
    %95 = vmatprep.subr.mxu0 0.0
    %96 = vmatpush1.msra.mxu0 0.0
    %97 = vmatprep.subr.mxu0 0.0
    %98 = vmatpush1.msra.mxu0 0.0
    %99 = vmatprep.subr.mxu0 0.0
    %100 = vmatpush1.msra.mxu0 0.0
    %101 = vmatprep.subr.mxu0 0.0
    %102 = vmatpush1.msra.mxu0 0.0
    %103 = vmatprep.subr.mxu0 0.0
    %104 = vmatpush1.msra.mxu0 0.0
    %105 = vmatprep.subr.mxu0 0.0
    %106 = vmatpush1.msra.mxu0 0.0
    %107 = vmatprep.subr.mxu0 0.0
    %108 = vmatpush1.msra.mxu0 0.0
    %109 = vmatprep.subr.mxu0 %v68
    %110 = vmatpush1.msra.mxu0 %v67
    %111 = vmatprep.subr.mxu0 %v66
    %112 = vmatpush1.msra.mxu0 %v65
    %113 = vmatprep.subr.mxu0 %v64
    %114 = vmatpush1.msra.mxu0 %v63
    %115 = vmatprep.subr.mxu0 %v62
    %116 = vmatpush1.msra.mxu0 %v61
    %117 = vmatprep.subr.mxu0 0.0
    %118 = vmatpush2.msra.mxu0 0.0
    %119 = vmatprep.subr.mxu0 0.0
    %120 = vmatpush2.msra.mxu0 0.0
    %121 = vmatprep.subr.mxu0 0.0
    %122 = vmatpush2.msra.mxu0 0.0
    %123 = vmatprep.subr.mxu0 0.0
    %124 = vmatpush2.msra.mxu0 0.0
    %125 = vmatprep.subr.mxu0 0.0
    %126 = vmatpush2.msra.mxu0 0.0
    %127 = vmatprep.subr.mxu0 0.0
    %128 = vmatpush2.msra.mxu0 0.0
    %129 = vmatprep.subr.mxu0 0.0
    %130 = vmatpush2.msra.mxu0 0.0
    %131 = vmatprep.subr.mxu0 0.0
    %132 = vmatpush2.msra.mxu0 0.0
    %133 = vmatprep.subr.mxu0 0.0
    %134 = vmatpush2.msra.mxu0 0.0
    %135 = vmatprep.subr.mxu0 0.0
    %136 = vmatpush2.msra.mxu0 0.0
    %137 = vmatprep.subr.mxu0 0.0
    %138 = vmatpush2.msra.mxu0 0.0
    %139 = vmatprep.subr.mxu0 0.0
    %140 = vmatpush2.msra.mxu0 0.0
    %141 = vmatprep.subr.mxu0 0.0
    %142 = vmatpush2.msra.mxu0 0.0
    %143 = vmatprep.subr.mxu0 0.0
    %144 = vmatpush2.msra.mxu0 0.0
    %145 = vmatprep.subr.mxu0 0.0
    %146 = vmatpush2.msra.mxu0 0.0
    %147 = vmatprep.subr.mxu0 0.0
    %148 = vmatpush2.msra.mxu0 0.0
    %149 = vmatprep.mubr.f32.mxu0 0.0
    %150 = vmatmul.mubr.f32.gmra.mxu0 %v83
    %v151 = vpop.f32.mrf.mxu0
    %v152 = vadd.f32 %v74, %v151
    %v153 = vpop.f32.mrf.mxu0
    %v154 = vadd.f32 %v78, %v153
    %155 = vdwg.mxu0
    %v156 = vmax.f32 %v152, 0.0
    %v157 = vmax.f32 %v154, 0.0
    %v158 = vld [vmem:[#allocation7] sm:$0xff]
    %v159 = vld [vmem:[#allocation7 + $0x8] sm:$0xff]
    %v160 = vld [vmem:[#allocation7 + $0x10] sm:$0xff]
    %v161 = vld [vmem:[#allocation7 + $0x18] sm:$0xff]
    %v162 = vld [vmem:[#allocation7 + $0x20] sm:$0xff]
    %v163 = vld [vmem:[#allocation7 + $0x28] sm:$0xff]
    %v164 = vld [vmem:[#allocation7 + $0x30] sm:$0xff]
    %v165 = vld [vmem:[#allocation7 + $0x38] sm:$0xff]
    %v166 = vld [vmem:[#allocation7 + $0x40] sm:$0xff]
    %v167 = vld [vmem:[#allocation7 + $0x48] sm:$0xff]
    %v168 = vld [vmem:[#allocation7 + $0x50] sm:$0xff]
    %v169 = vld [vmem:[#allocation7 + $0x58] sm:$0xff]
    %v170 = vld [vmem:[#allocation7 + $0x60] sm:$0xff]
    %v171 = vld [vmem:[#allocation7 + $0x68] sm:$0xff]
    %v172 = vld [vmem:[#allocation7 + $0x70] sm:$0xff]
    %v173 = vld [vmem:[#allocation7 + $0x78] sm:$0xff]
    %v174 = vld [vmem:[#allocation7 + $0x80] sm:$0xff]
    %v175 = vld [vmem:[#allocation7 + $0x88] sm:$0xff]
    %v176 = vld [vmem:[#allocation7 + $0x90] sm:$0xff]
    %v177 = vld [vmem:[#allocation7 + $0x98] sm:$0xff]
    %v178 = vld [vmem:[#allocation7 + $0xa0] sm:$0xff]
    %v179 = vld [vmem:[#allocation7 + $0xa8] sm:$0xff]
    %v180 = vld [vmem:[#allocation7 + $0xb0] sm:$0xff]
    %v181 = vld [vmem:[#allocation7 + $0xb8] sm:$0xff]
    %v182 = vld [vmem:[#allocation7 + $0xc0] sm:$0xff]
    %v183 = vld [vmem:[#allocation7 + $0xc8] sm:$0xff]
    %v184 = vld [vmem:[#allocation7 + $0xd0] sm:$0xff]
    %v185 = vld [vmem:[#allocation7 + $0xd8] sm:$0xff]
    %v186 = vld [vmem:[#allocation7 + $0xe0] sm:$0xff]
    %v187 = vld [vmem:[#allocation7 + $0xe8] sm:$0xff]
    %v188 = vld [vmem:[#allocation7 + $0xf0] sm:$0xff]
    %v189 = vld [vmem:[#allocation7 + $0xf8] sm:$0xff]
    %v190 = vld [vmem:[%s4] sm:$0x1]
    %v192 = vlaneseq
    %v193 = vshrl.u32 %v192, 7
    %v194 = vsub.s32 0, %v193
    %v195 = vrot.slane %v190, %v194
    %197 = vmatprep.subr.mxu0 0.0
    %198 = vmatpush1.msra.mxu0 %v173
    %199 = vmatprep.subr.mxu0 0.0
    %200 = vmatpush1.msra.mxu0 %v172
    %201 = vmatprep.subr.mxu0 0.0
    %202 = vmatpush1.msra.mxu0 %v171
    %203 = vmatprep.subr.mxu0 0.0
    %204 = vmatpush1.msra.mxu0 %v170
    %205 = vmatprep.subr.mxu0 0.0
    %206 = vmatpush1.msra.mxu0 %v169
    %207 = vmatprep.subr.mxu0 0.0
    %208 = vmatpush1.msra.mxu0 %v168
    %209 = vmatprep.subr.mxu0 0.0
    %210 = vmatpush1.msra.mxu0 %v167
    %211 = vmatprep.subr.mxu0 0.0
    %212 = vmatpush1.msra.mxu0 %v166
    %213 = vmatprep.subr.mxu0 0.0
    %214 = vmatpush1.msra.mxu0 %v165
    %215 = vmatprep.subr.mxu0 0.0
    %216 = vmatpush1.msra.mxu0 %v164
    %217 = vmatprep.subr.mxu0 0.0
    %218 = vmatpush1.msra.mxu0 %v163
    %219 = vmatprep.subr.mxu0 0.0
    %220 = vmatpush1.msra.mxu0 %v162
    %221 = vmatprep.subr.mxu0 0.0
    %222 = vmatpush1.msra.mxu0 %v161
    %223 = vmatprep.subr.mxu0 0.0
    %224 = vmatpush1.msra.mxu0 %v160
    %225 = vmatprep.subr.mxu0 0.0
    %226 = vmatpush1.msra.mxu0 %v159
    %227 = vmatprep.subr.mxu0 0.0
    %228 = vmatpush1.msra.mxu0 %v158
    %229 = vmatprep.subr.mxu0 0.0
    %230 = vmatpush2.msra.mxu0 %v189
    %231 = vmatprep.subr.mxu0 0.0
    %232 = vmatpush2.msra.mxu0 %v188
    %233 = vmatprep.subr.mxu0 0.0
    %234 = vmatpush2.msra.mxu0 %v187
    %235 = vmatprep.subr.mxu0 0.0
    %236 = vmatpush2.msra.mxu0 %v186
    %237 = vmatprep.subr.mxu0 0.0
    %238 = vmatpush2.msra.mxu0 %v185
    %239 = vmatprep.subr.mxu0 0.0
    %240 = vmatpush2.msra.mxu0 %v184
    %241 = vmatprep.subr.mxu0 0.0
    %242 = vmatpush2.msra.mxu0 %v183
    %243 = vmatprep.subr.mxu0 0.0
    %244 = vmatpush2.msra.mxu0 %v182
    %245 = vmatprep.subr.mxu0 0.0
    %246 = vmatpush2.msra.mxu0 %v181
    %247 = vmatprep.subr.mxu0 0.0
    %248 = vmatpush2.msra.mxu0 %v180
    %249 = vmatprep.subr.mxu0 0.0
    %250 = vmatpush2.msra.mxu0 %v179
    %251 = vmatprep.subr.mxu0 0.0
    %252 = vmatpush2.msra.mxu0 %v178
    %253 = vmatprep.subr.mxu0 0.0
    %254 = vmatpush2.msra.mxu0 %v177
    %255 = vmatprep.subr.mxu0 0.0
    %256 = vmatpush2.msra.mxu0 %v176
    %257 = vmatprep.subr.mxu0 0.0
    %258 = vmatpush2.msra.mxu0 %v175
    %259 = vmatprep.subr.mxu0 0.0
    %260 = vmatpush2.msra.mxu0 %v174
    %261 = vmatprep.mubr.f32.mxu0 %v157
    %262 = vmatmul.mubr.f32.gmra.mxu0 %v156
    %v263 = vpop.f32.mrf.mxu0
    %v264 = vadd.f32 %v195, %v263
    %v265 = vpop.f32.mrf.mxu0
    %266 = vdwg.mxu0
    %v267 = vlaneseq
    %v268 = vand.u32 %v267, 127
    %v269 = vtanh.pop %v264
    %v270 = vand.u32 2147483647, %v264
    %v271 = vsub.f32 0.0, %v270
    %v272 = vmul.f32 %v271, 1.442695
    %v273 = vpow.pop %v272
    %v274 = vadd.f32 %v273, 1.0
    %v275 = vlog2.pop %v274
    %v276 = vmul.f32 %v275, 0.6931472
    %v277 = vmul.f32 -0.5, %v273
    %v278 = vadd.f32 %v277, 1.0
    %v279 = vmul.f32 %v278, %v273
    %v280 = vand.u32 2147483647, %v273
    %vm281 = vcmp.lt.f32.partialorder %v280, 0.0004427343
    %v282 = vsel %vm281, %v279, %v276
    %v283 = vmax.f32 %v264, 0.0
    %v284 = vadd.f32 %v282, %v283
    %vm285 = vcmp.lt.s32.totalorder %v268, 8
    %vm286 = vcmp.lt.s32.totalorder %v268, 16
    %v287 = vsel %vm286, %v284, %v264
    %v288 = vsel %vm285, %v269, %v287
    %289 = vst [vmem:[#allocation8] sm:$0xff] %v288
    // Predicated region
    $region34: #{tpu_custom_call.1} parent=1 // pred_check
      _
    $region35: #{tpu_custom_call.1} parent=1 // pred_check_branch
      %291 = sbr.rel (0) target = $region37
    $region36: #{tpu_custom_call.1} parent=1 // pred_region
      %s293 = ssub.s32 128, 128
      %294 = vsyncadd [#allocation4], %s293
      %s296 = sshll.u32 [#allocation8], 4
      %s297 = int_to_ptr.vmem [resolvable:$true] %s296
      %299 = dma.vmem_to_hbm [thread:$0]  %s297, 128, %s5, [#allocation4]
    $region37: #{tpu_custom_call.1} parent=1 // pred_fallthru
      _
    // Predicated region
    $region38: #{tpu_custom_call.1} parent=1 // pred_check
      _
    $region39: #{tpu_custom_call.1} parent=1 // pred_check_branch
      %301 = sbr.rel (0) target = $region41
    $region40: #{tpu_custom_call.1} parent=1 // pred_region
      %302 = dma.done [#allocation4], 128
    $region41: #{tpu_custom_call.1} parent=1 // pred_fallthru
      _
    %303 = vsyncpa [#allocation3], 1
    %304 = vsyncpa [#allocation6], 1
    %305 = vsyncpa [#allocation4], 1

// kernel: tpu_custom_call.1
$region0: #{tpu_custom_call.1}
  #allocation0 [shape = 'u32[]', space=smem, size = 0x4, offset = 0x4, fixed_abs, tag = 'smem constant byte address 0x4 - core index']
  #allocation1 [shape = 'u32[144,128]{1,0:T(1,128)}', space=vmem, size = 0x12000, scoped, tag = 'internal scratch']
  %s0 = inlined_call_operand.hbm [shape: f32[8,32], index: 0, kind: input, shape index: {}]
  %s1 = inlined_call_operand.hbm [shape: f32[32,256], index: 1, kind: input, shape index: {}]
  %s2 = inlined_call_operand.vmem [shape: f32[1,256], index: 2, kind: input, shape index: {}]
  %s3 = inlined_call_operand.hbm [shape: f32[256,128], index: 3, kind: input, shape index: {}]
  %s4 = inlined_call_operand.vmem [shape: f32[1,128], index: 4, kind: input, shape index: {}]
  %s5 = inlined_call_operand.hbm [shape: f32[8,128], index: 5, kind: output, shape index: {}]
  %s6 = sld [smem:[#allocation0]]
  $region42: #{tpu_custom_call.1} parent=0
    _
  %s8 = ssub.s32 1, %s6
  %s9 = scalar_select 0, %s8, %s6
  $region1: #{tpu_custom_call.1} parent=0
    #allocation2 [shape = 'u8[4096]{0}', space=vmem, size = 0x1000, scoped, tag = 'input window, operand 0, single buffered']
    #allocation3 [shape = 's32[1]{0}', space=sflag, size = 0x4, scoped, tag = 'scoped memory for tpu_custom_call.1']
    #allocation4 [shape = 's32[1]{0}', space=sflag, size = 0x4, scoped, tag = 'scoped memory for tpu_custom_call.1']
    #allocation5 [shape = 'u8[32768]{0}', space=vmem, size = 0x8000, scoped, tag = 'input window, operand 1, single buffered']
    #allocation6 [shape = 's32[1]{0}', space=sflag, size = 0x4, scoped, tag = 'scoped memory for tpu_custom_call.1']
    #allocation7 [shape = 'u8[131072]{0}', space=vmem, size = 0x20000, scoped, tag = 'input window, operand 3, single buffered']
    #allocation8 [shape = 'u8[4096]{0}', space=vmem, size = 0x1000, scoped, tag = 'output window, operand 0, single buffered']
    %10 = vsyncpa [#allocation3], 0
    %11 = vsyncpa [#allocation6], 0
    %12 = vsyncpa [#allocation4], 0
    // Predicated region
    $region2: #{tpu_custom_call.1} parent=1 // pred_check
      _
    $region3: #{tpu_custom_call.1} parent=1 // pred_check_branch
      %14 = sbr.rel (0) target = $region5
    $region4: #{tpu_custom_call.1} parent=1 // pred_region
      %s16 = ssub.s32 128, 128
      %17 = vsyncadd [#allocation3], %s16
      %s19 = sshll.u32 [#allocation2], 4
      %s20 = int_to_ptr.vmem [resolvable:$true] %s19
      %22 = dma.hbm_to_vmem [thread:$0]  %s0, 128, %s20, [#allocation3]
    $region5: #{tpu_custom_call.1} parent=1 // pred_fallthru
      _
    // Predicated region
    $region6: #{tpu_custom_call.1} parent=1 // pred_check
      _
    $region7: #{tpu_custom_call.1} parent=1 // pred_check_branch
      %24 = sbr.rel (0) target = $region9
    $region8: #{tpu_custom_call.1} parent=1 // pred_region
      %s26 = ssub.s32 1024, 1024
      %27 = vsyncadd [#allocation6], %s26
      %s28 = sshll.u32 [#allocation5], 4
      %s29 = int_to_ptr.vmem [resolvable:$true] %s28
      %34 = dma.hbm_to_vmem [thread:$0]  %s1, 1024, %s29, [#allocation6], 256, 256, 16
    $region9: #{tpu_custom_call.1} parent=1 // pred_fallthru
      _
    // Predicated region
    $region10: #{tpu_custom_call.1} parent=1 // pred_check
      _
    $region11: #{tpu_custom_call.1} parent=1 // pred_check_branch
      %36 = sbr.rel (0) target = $region13
    $region12: #{tpu_custom_call.1} parent=1 // pred_region
      _
    $region13: #{tpu_custom_call.1} parent=1 // pred_fallthru
      _
    // Predicated region
    $region14: #{tpu_custom_call.1} parent=1 // pred_check
      _
    $region15: #{tpu_custom_call.1} parent=1 // pred_check_branch
      %38 = sbr.rel (0) target = $region17
    $region16: #{tpu_custom_call.1} parent=1 // pred_region
      %s40 = ssub.s32 4096, 4096
      %41 = vsyncadd [#allocation6], %s40
      %s42 = sshll.u32 [#allocation7], 4
      %s43 = int_to_ptr.vmem [resolvable:$true] %s42
      %48 = dma.hbm_to_vmem [thread:$0]  %s3, 4096, %s43, [#allocation6], 128, 128, 8
    $region17: #{tpu_custom_call.1} parent=1 // pred_fallthru
      _
    // Predicated region
    $region18: #{tpu_custom_call.1} parent=1 // pred_check
      _
    $region19: #{tpu_custom_call.1} parent=1 // pred_check_branch
      %50 = sbr.rel (0) target = $region21
    $region20: #{tpu_custom_call.1} parent=1 // pred_region
      _
    $region21: #{tpu_custom_call.1} parent=1 // pred_fallthru
      _
    // Predicated region
    $region22: #{tpu_custom_call.1} parent=1 // pred_check
      _
    $region23: #{tpu_custom_call.1} parent=1 // pred_check_branch
      %52 = sbr.rel (0) target = $region25
    $region24: #{tpu_custom_call.1} parent=1 // pred_region
      %53 = dma.done [#allocation3], 128
    $region25: #{tpu_custom_call.1} parent=1 // pred_fallthru
      _
    // Predicated region
    $region26: #{tpu_custom_call.1} parent=1 // pred_check
      _
    $region27: #{tpu_custom_call.1} parent=1 // pred_check_branch
      %55 = sbr.rel (0) target = $region29
    $region28: #{tpu_custom_call.1} parent=1 // pred_region
      %56 = dma.done [#allocation6], 1024
    $region29: #{tpu_custom_call.1} parent=1 // pred_fallthru
      _
    // Predicated region
    $region30: #{tpu_custom_call.1} parent=1 // pred_check
      _
    $region31: #{tpu_custom_call.1} parent=1 // pred_check_branch
      %58 = sbr.rel (0) target = $region33
    $region32: #{tpu_custom_call.1} parent=1 // pred_region
      %59 = dma.done [#allocation6], 4096
    $region33: #{tpu_custom_call.1} parent=1 // pred_fallthru
      _
    %v60 = vld [vmem:[#allocation2] sm:$0xff]
    %v61 = vld [vmem:[#allocation5] sm:$0xff]
    %v62 = vld [vmem:[#allocation5 + $0x8] sm:$0xff]
    %v63 = vld [vmem:[#allocation5 + $0x10] sm:$0xff]
    %v64 = vld [vmem:[#allocation5 + $0x18] sm:$0xff]
    %v65 = vld [vmem:[#allocation5 + $0x20] sm:$0xff]
    %v66 = vld [vmem:[#allocation5 + $0x28] sm:$0xff]
    %v67 = vld [vmem:[#allocation5 + $0x30] sm:$0xff]
    %v68 = vld [vmem:[#allocation5 + $0x38] sm:$0xff]
    %v69 = vld [vmem:[%s2] sm:$0x3]
    %v71 = vlaneseq
    %v72 = vshrl.u32 %v71, 7
    %v73 = vsub.s32 0, %v72
    %v74 = vrot.slane %v69, %v73
    %v75 = vlaneseq
    %v76 = vshrl.u32 %v75, 7
    %v77 = vsub.s32 1, %v76
    %v78 = vrot.slane %v69, %v77
    %vm81 = vcmask 261120
    %v83 = vsel %vm81, %v60, 0
    %85 = vmatprep.subr.mxu0 0.0
    %86 = vmatpush1.msra.mxu0 0.0
    %87 = vmatprep.subr.mxu0 0.0
    %88 = vmatpush1.msra.mxu0 0.0
    %89 = vmatprep.subr.mxu0 0.0
    %90 = vmatpush1.msra.mxu0 0.0
    %91 = vmatprep.subr.mxu0 0.0
    %92 = vmatpush1.msra.mxu0 0.0
    %93 = vmatprep.subr.mxu0 0.0
    %94 = vmatpush1.msra.mxu0 0.0
    %95 = vmatprep.subr.mxu0 0.0
    %96 = vmatpush1.msra.mxu0 0.0
    %97 = vmatprep.subr.mxu0 0.0
    %98 = vmatpush1.msra.mxu0 0.0
    %99 = vmatprep.subr.mxu0 0.0
    %100 = vmatpush1.msra.mxu0 0.0
    %101 = vmatprep.subr.mxu0 0.0
    %102 = vmatpush1.msra.mxu0 0.0
    %103 = vmatprep.subr.mxu0 0.0
    %104 = vmatpush1.msra.mxu0 0.0
    %105 = vmatprep.subr.mxu0 0.0
    %106 = vmatpush1.msra.mxu0 0.0
    %107 = vmatprep.subr.mxu0 0.0
    %108 = vmatpush1.msra.mxu0 0.0
    %109 = vmatprep.subr.mxu0 %v68
    %110 = vmatpush1.msra.mxu0 %v67
    %111 = vmatprep.subr.mxu0 %v66
    %112 = vmatpush1.msra.mxu0 %v65
    %113 = vmatprep.subr.mxu0 %v64
    %114 = vmatpush1.msra.mxu0 %v63
    %115 = vmatprep.subr.mxu0 %v62
    %116 = vmatpush1.msra.mxu0 %v61
    %117 = vmatprep.subr.mxu0 0.0
    %118 = vmatpush2.msra.mxu0 0.0
    %119 = vmatprep.subr.mxu0 0.0
    %120 = vmatpush2.msra.mxu0 0.0
    %121 = vmatprep.subr.mxu0 0.0
    %122 = vmatpush2.msra.mxu0 0.0
    %123 = vmatprep.subr.mxu0 0.0
    %124 = vmatpush2.msra.mxu0 0.0
    %125 = vmatprep.subr.mxu0 0.0
    %126 = vmatpush2.msra.mxu0 0.0
    %127 = vmatprep.subr.mxu0 0.0
    %128 = vmatpush2.msra.mxu0 0.0
    %129 = vmatprep.subr.mxu0 0.0
    %130 = vmatpush2.msra.mxu0 0.0
    %131 = vmatprep.subr.mxu0 0.0
    %132 = vmatpush2.msra.mxu0 0.0
    %133 = vmatprep.subr.mxu0 0.0
    %134 = vmatpush2.msra.mxu0 0.0
    %135 = vmatprep.subr.mxu0 0.0
    %136 = vmatpush2.msra.mxu0 0.0
    %137 = vmatprep.subr.mxu0 0.0
    %138 = vmatpush2.msra.mxu0 0.0
    %139 = vmatprep.subr.mxu0 0.0
    %140 = vmatpush2.msra.mxu0 0.0
    %141 = vmatprep.subr.mxu0 0.0
    %142 = vmatpush2.msra.mxu0 0.0
    %143 = vmatprep.subr.mxu0 0.0
    %144 = vmatpush2.msra.mxu0 0.0
    %145 = vmatprep.subr.mxu0 0.0
    %146 = vmatpush2.msra.mxu0 0.0
    %147 = vmatprep.subr.mxu0 0.0
    %148 = vmatpush2.msra.mxu0 0.0
    %149 = vmatprep.mubr.f32.mxu0 0.0
    %150 = vmatmul.mubr.f32.gmra.mxu0 %v83
    %v151 = vpop.f32.mrf.mxu0
    %v152 = vadd.f32 %v74, %v151
    %v153 = vpop.f32.mrf.mxu0
    %v154 = vadd.f32 %v78, %v153
    %155 = vdwg.mxu0
    %v156 = vmax.f32 %v152, 0.0
    %v157 = vmax.f32 %v154, 0.0
    %v158 = vld [vmem:[#allocation7] sm:$0xff]
    %v159 = vld [vmem:[#allocation7 + $0x8] sm:$0xff]
    %v160 = vld [vmem:[#allocation7 + $0x10] sm:$0xff]
    %v161 = vld [vmem:[#allocation7 + $0x18] sm:$0xff]
    %v162 = vld [vmem:[#allocation7 + $0x20] sm:$0xff]
    %v163 = vld [vmem:[#allocation7 + $0x28] sm:$0xff]
    %v164 = vld [vmem:[#allocation7 + $0x30] sm:$0xff]
    %v165 = vld [vmem:[#allocation7 + $0x38] sm:$0xff]
    %v166 = vld [vmem:[#allocation7 + $0x40] sm:$0xff]
    %v167 = vld [vmem:[#allocation7 + $0x48] sm:$0xff]
    %v168 = vld [vmem:[#allocation7 + $0x50] sm:$0xff]
    %v169 = vld [vmem:[#allocation7 + $0x58] sm:$0xff]
    %v170 = vld [vmem:[#allocation7 + $0x60] sm:$0xff]
    %v171 = vld [vmem:[#allocation7 + $0x68] sm:$0xff]
    %v172 = vld [vmem:[#allocation7 + $0x70] sm:$0xff]
    %v173 = vld [vmem:[#allocation7 + $0x78] sm:$0xff]
    %v174 = vld [vmem:[#allocation7 + $0x80] sm:$0xff]
    %v175 = vld [vmem:[#allocation7 + $0x88] sm:$0xff]
    %v176 = vld [vmem:[#allocation7 + $0x90] sm:$0xff]
    %v177 = vld [vmem:[#allocation7 + $0x98] sm:$0xff]
    %v178 = vld [vmem:[#allocation7 + $0xa0] sm:$0xff]
    %v179 = vld [vmem:[#allocation7 + $0xa8] sm:$0xff]
    %v180 = vld [vmem:[#allocation7 + $0xb0] sm:$0xff]
    %v181 = vld [vmem:[#allocation7 + $0xb8] sm:$0xff]
    %v182 = vld [vmem:[#allocation7 + $0xc0] sm:$0xff]
    %v183 = vld [vmem:[#allocation7 + $0xc8] sm:$0xff]
    %v184 = vld [vmem:[#allocation7 + $0xd0] sm:$0xff]
    %v185 = vld [vmem:[#allocation7 + $0xd8] sm:$0xff]
    %v186 = vld [vmem:[#allocation7 + $0xe0] sm:$0xff]
    %v187 = vld [vmem:[#allocation7 + $0xe8] sm:$0xff]
    %v188 = vld [vmem:[#allocation7 + $0xf0] sm:$0xff]
    %v189 = vld [vmem:[#allocation7 + $0xf8] sm:$0xff]
    %v190 = vld [vmem:[%s4] sm:$0x1]
    %v192 = vlaneseq
    %v193 = vshrl.u32 %v192, 7
    %v194 = vsub.s32 0, %v193
    %v195 = vrot.slane %v190, %v194
    %197 = vmatprep.subr.mxu0 0.0
    %198 = vmatpush1.msra.mxu0 %v173
    %199 = vmatprep.subr.mxu0 0.0
    %200 = vmatpush1.msra.mxu0 %v172
    %201 = vmatprep.subr.mxu0 0.0
    %202 = vmatpush1.msra.mxu0 %v171
    %203 = vmatprep.subr.mxu0 0.0
    %204 = vmatpush1.msra.mxu0 %v170
    %205 = vmatprep.subr.mxu0 0.0
    %206 = vmatpush1.msra.mxu0 %v169
    %207 = vmatprep.subr.mxu0 0.0
    %208 = vmatpush1.msra.mxu0 %v168
    %209 = vmatprep.subr.mxu0 0.0
    %210 = vmatpush1.msra.mxu0 %v167
    %211 = vmatprep.subr.mxu0 0.0
    %212 = vmatpush1.msra.mxu0 %v166
    %213 = vmatprep.subr.mxu0 0.0
    %214 = vmatpush1.msra.mxu0 %v165
    %215 = vmatprep.subr.mxu0 0.0
    %216 = vmatpush1.msra.mxu0 %v164
    %217 = vmatprep.subr.mxu0 0.0
    %218 = vmatpush1.msra.mxu0 %v163
    %219 = vmatprep.subr.mxu0 0.0
    %220 = vmatpush1.msra.mxu0 %v162
    %221 = vmatprep.subr.mxu0 0.0
    %222 = vmatpush1.msra.mxu0 %v161
    %223 = vmatprep.subr.mxu0 0.0
    %224 = vmatpush1.msra.mxu0 %v160
    %225 = vmatprep.subr.mxu0 0.0
    %226 = vmatpush1.msra.mxu0 %v159
    %227 = vmatprep.subr.mxu0 0.0
    %228 = vmatpush1.msra.mxu0 %v158
    %229 = vmatprep.subr.mxu0 0.0
    %230 = vmatpush2.msra.mxu0 %v189
    %231 = vmatprep.subr.mxu0 0.0
    %232 = vmatpush2.msra.mxu0 %v188
    %233 = vmatprep.subr.mxu0 0.0
    %234 = vmatpush2.msra.mxu0 %v187
    %235 = vmatprep.subr.mxu0 0.0
    %236 = vmatpush2.msra.mxu0 %v186
    %237 = vmatprep.subr.mxu0 0.0
    %238 = vmatpush2.msra.mxu0 %v185
    %239 = vmatprep.subr.mxu0 0.0
    %240 = vmatpush2.msra.mxu0 %v184
    %241 = vmatprep.subr.mxu0 0.0
    %242 = vmatpush2.msra.mxu0 %v183
    %243 = vmatprep.subr.mxu0 0.0
    %244 = vmatpush2.msra.mxu0 %v182
    %245 = vmatprep.subr.mxu0 0.0
    %246 = vmatpush2.msra.mxu0 %v181
    %247 = vmatprep.subr.mxu0 0.0
    %248 = vmatpush2.msra.mxu0 %v180
    %249 = vmatprep.subr.mxu0 0.0
    %250 = vmatpush2.msra.mxu0 %v179
    %251 = vmatprep.subr.mxu0 0.0
    %252 = vmatpush2.msra.mxu0 %v178
    %253 = vmatprep.subr.mxu0 0.0
    %254 = vmatpush2.msra.mxu0 %v177
    %255 = vmatprep.subr.mxu0 0.0
    %256 = vmatpush2.msra.mxu0 %v176
    %257 = vmatprep.subr.mxu0 0.0
    %258 = vmatpush2.msra.mxu0 %v175
    %259 = vmatprep.subr.mxu0 0.0
    %260 = vmatpush2.msra.mxu0 %v174
    %261 = vmatprep.mubr.f32.mxu0 %v157
    %262 = vmatmul.mubr.f32.gmra.mxu0 %v156
    %v263 = vpop.f32.mrf.mxu0
    %v264 = vadd.f32 %v195, %v263
    %v265 = vpop.f32.mrf.mxu0
    %266 = vdwg.mxu0
    %v267 = vlaneseq
    %v268 = vand.u32 %v267, 127
    %v269 = vtanh.pop %v264
    %v270 = vand.u32 2147483647, %v264
    %v271 = vsub.f32 0.0, %v270
    %v272 = vmul.f32 %v271, 1.442695
    %v273 = vpow.pop %v272
    %v274 = vadd.f32 %v273, 1.0
    %v275 = vlog2.pop %v274
    %v276 = vmul.f32 %v275, 0.6931472
    %v277 = vmul.f32 -0.5, %v273
    %v278 = vadd.f32 %v277, 1.0
    %v279 = vmul.f32 %v278, %v273
    %v280 = vand.u32 2147483647, %v273
    %vm281 = vcmp.lt.f32.partialorder %v280, 0.0004427343
    %v282 = vsel %vm281, %v279, %v276
    %v283 = vmax.f32 %v264, 0.0
    %v284 = vadd.f32 %v282, %v283
    %vm285 = vcmp.lt.s32.totalorder %v268, 8
    %vm286 = vcmp.lt.s32.totalorder %v268, 16
    %v287 = vsel %vm286, %v284, %v264
    %v288 = vsel %vm285, %v269, %v287
    %289 = vst [vmem:[#allocation8] sm:$0xff] %v288
    // Predicated region
    $region34: #{tpu_custom_call.1} parent=1 // pred_check
      _
    $region35: #{tpu_custom_call.1} parent=1 // pred_check_branch
      %291 = sbr.rel (0) target = $region37
    $region36: #{tpu_custom_call.1} parent=1 // pred_region
      %s293 = ssub.s32 128, 128
      %294 = vsyncadd [#allocation4], %s293
      %s296 = sshll.u32 [#allocation8], 4
      %s297 = int_to_ptr.vmem [resolvable:$true] %s296
      %299 = dma.vmem_to_hbm [thread:$0]  %s297, 128, %s5, [#allocation4]
    $region37: #{tpu_custom_call.1} parent=1 // pred_fallthru
      _
    // Predicated region
    $region38: #{tpu_custom_call.1} parent=1 // pred_check
      _
    $region39: #{tpu_custom_call.1} parent=1 // pred_check_branch
      %301 = sbr.rel (0) target = $region41
    $region40: #{tpu_custom_call.1} parent=1 // pred_region
      %302 = dma.done [#allocation4], 128
    $region41: #{tpu_custom_call.1} parent=1 // pred_fallthru
      _
    %303 = vsyncpa [#allocation3], 1
    %304 = vsyncpa [#allocation6], 1
    %305 = vsyncpa [#allocation4], 1

</llo_original>
